<compile_context>
chip_gen: v7x
topology: tpu7x:2x2x1
jax: 0.10.0
libtpu: 0.0.40
codegen_flags: <defaults>
</compile_context>

<pallas_src>
import functools

import jax
import jax.numpy as jnp
from jax.experimental import pallas as pl
from jax.experimental.pallas import tpu as pltpu


def _round_up(x: int, m: int) -> int:
    return ((x + m - 1) // m) * m


def rbm_forward_kernel(v_ref, w_ref, bh_ref, u_ref, h_ref, samp_ref, acc_ref):
    k = pl.program_id(2)

    @pl.when(k == 0)
    def _init():
        acc_ref[...] = jnp.zeros_like(acc_ref)

    # MXU matmul: bf16 inputs, f32 accumulation.
    acc_ref[...] += jnp.dot(
        v_ref[...], w_ref[...], preferred_element_type=jnp.float32
    )

    @pl.when(k == pl.num_programs(2) - 1)
    def _finalize():
        # Bias broadcast over the batch tile, sigmoid, then Bernoulli via u < h.
        h = jax.nn.sigmoid(acc_ref[...] + bh_ref[...])
        h_ref[...] = h.astype(h_ref.dtype)
        samp_ref[...] = (u_ref[...] < h).astype(samp_ref.dtype)


@functools.partial(jax.jit, static_argnames=("tm", "tn", "tk"))
def _rbm_forward_padded(vp, Wp, bhp, up, *, tm, tn, tk):
    Bp, Vp = vp.shape
    _, Hp = Wp.shape
    grid = (Bp // tm, Hp // tn, Vp // tk)

    cost = pl.CostEstimate(
        flops=2 * Bp * Vp * Hp,
        transcendentals=Bp * Hp,
        bytes_accessed=(
            Bp * Vp * vp.dtype.itemsize
            + Vp * Hp * Wp.dtype.itemsize
            + Bp * Hp * up.dtype.itemsize
            + 2 * Bp * Hp * 4
        ),
    )

    return pl.pallas_call(
        rbm_forward_kernel,
        out_shape=(
            jax.ShapeDtypeStruct((Bp, Hp), jnp.float32),  # h (probabilities)
            jax.ShapeDtypeStruct((Bp, Hp), jnp.float32),  # bernoulli(h)
        ),
        grid=grid,
        in_specs=[
            pl.BlockSpec((tm, tk), lambda i, j, k: (i, k)),  # v tile
            pl.BlockSpec((tk, tn), lambda i, j, k: (k, j)),  # W tile
            pl.BlockSpec((1, tn), lambda i, j, k: (0, j)),   # b_h tile
            pl.BlockSpec((tm, tn), lambda i, j, k: (i, j)),  # uniform noise tile
        ],
        out_specs=(
            pl.BlockSpec((tm, tn), lambda i, j, k: (i, j)),
            pl.BlockSpec((tm, tn), lambda i, j, k: (i, j)),
        ),
        scratch_shapes=[pltpu.VMEM((tm, tn), jnp.float32)],
        compiler_params=pltpu.CompilerParams(
            dimension_semantics=("parallel", "parallel", "arbitrary"),
        ),
        cost_estimate=cost,
    )(vp, Wp, bhp, up)


def rbm_forward(v, W, b_h, key, *, tm=256, tn=256, tk=512):
    """v: [B, V] f32, W: [V, H] f32, b_h: [H] f32 -> (h, bernoulli(h)), each [B, H] f32."""
    B, V = v.shape
    Vw, H = W.shape
    assert V == Vw

    # Shrink tiles for small problems, keep (8, 128) alignment.
    tm = min(tm, _round_up(B, 8))
    tn = min(tn, _round_up(H, 128))
    tk = min(tk, _round_up(V, 128))
    Bp, Vp, Hp = _round_up(B, tm), _round_up(V, tk), _round_up(H, tn)

    # Zero-pad to tile-aligned, lane-dense shapes; bf16 matmul inputs (f32 accumulation).
    vp = jnp.pad(v, ((0, Bp - B), (0, Vp - V))).astype(jnp.bfloat16)
    Wp = jnp.pad(W, ((0, Vp - V), (0, Hp - H))).astype(jnp.bfloat16)
    bhp = jnp.pad(b_h.reshape(1, H), ((0, 0), (0, Hp - H))).astype(jnp.float32)

    # Uniform noise for Bernoulli sampling, generated with JAX's counter-based PRNG
    # (independent per element, no per-tile seed correlation).
    up = jax.random.uniform(key, (Bp, Hp), dtype=jnp.float32)

    h_pad, samp_pad = _rbm_forward_padded(vp, Wp, bhp, up, tm=tm, tn=tn, tk=tk)
    return h_pad[:B, :H], samp_pad[:B, :H]


if __name__ == "__main__":
    visible_size = 4
    hidden_size = 3

    key = jax.random.PRNGKey(0)
    k_w, k_bv, k_bh, k_samp = jax.random.split(key, 4)
    # Deterministic "randn" init matching nn.Parameter(torch.randn(...)) shapes.
    W = jax.random.normal(k_w, (visible_size, hidden_size), dtype=jnp.float32)
    b_v = jax.random.normal(k_bv, (visible_size,), dtype=jnp.float32)  # unused in forward
    b_h = jax.random.normal(k_bh, (hidden_size,), dtype=jnp.float32)

    # Same input as the reference script: v = [[1, 0, 1, 0]]
    v = jnp.array([[1.0, 0.0, 1.0, 0.0]], dtype=jnp.float32)

    h, h_sample = rbm_forward(v, W, b_h, k_samp)
    jax.block_until_ready(h)
    jax.block_until_ready(h_sample)

    # Reference for the deterministic part (same bf16-input / f32-accumulate recipe).
    h_ref = jax.nn.sigmoid(
        jnp.dot(v.astype(jnp.bfloat16), W.astype(jnp.bfloat16),
                preferred_element_type=jnp.float32)
        + b_h
    )
    assert h.shape == (1, hidden_size) and h_sample.shape == (1, hidden_size)
    assert jnp.allclose(h, h_ref, atol=1e-3, rtol=1e-3), (h, h_ref)
    assert bool(jnp.all((h_sample == 0.0) | (h_sample == 1.0)))
    # Probabilities must be in (0, 1).
    assert bool(jnp.all((h > 0.0) & (h < 1.0)))

    print("KERNEL_OK")
</pallas_src>

<mosaic_0001>
module attributes {stable_mosaic.version = 11 : i64} {
  func.func @rbm_forward_kernel(%arg0: i32, %arg1: i32, %arg2: i32, %arg3: memref<8x128xbf16, #tpu.memory_space<vmem>>, %arg4: memref<128x128xbf16, #tpu.memory_space<vmem>>, %arg5: memref<1x128xf32, #tpu.memory_space<vmem>>, %arg6: memref<8x128xf32, #tpu.memory_space<vmem>>, %arg7: memref<8x128xf32, #tpu.memory_space<vmem>>, %arg8: memref<8x128xf32, #tpu.memory_space<vmem>>, %arg9: memref<8x128xf32, #tpu.memory_space<vmem>>) attributes {dimension_semantics = [#tpu.dimension_semantics<parallel>, #tpu.dimension_semantics<parallel>, #tpu.dimension_semantics<arbitrary>], iteration_bounds = array<i64: 1, 1, 1>, scalar_prefetch = 0 : i64, scratch_operands = 1 : i64, tpu.core_type = #tpu.core_type<tc>, window_params = [{transform_indices = @transform_0, window_bounds = array<i64: 8, 128>}, {transform_indices = @transform_1, window_bounds = array<i64: 128, 128>}, {transform_indices = @transform_2, window_bounds = array<i64: 1, 128>}, {transform_indices = @transform_3, window_bounds = array<i64: 8, 128>}, {transform_indices = @transform_4, window_bounds = array<i64: 8, 128>}, {transform_indices = @transform_5, window_bounds = array<i64: 8, 128>}]} {
    %c0_i32 = arith.constant 0 : i32
    %0 = arith.cmpi eq, %arg2, %c0_i32 : i32
    %1 = arith.extui %0 : i1 to i32
    %c0_i32_0 = arith.constant 0 : i32
    %2 = arith.cmpi ne, %1, %c0_i32_0 : i32
    scf.if %2 {
      %cst_10 = arith.constant 0.000000e+00 : f32
      %12 = vector.broadcast %cst_10 : f32 to vector<8x128xf32>
      %c0_11 = arith.constant 0 : index
      %c0_12 = arith.constant 0 : index
      %13 = vector.load %arg9[%c0_11, %c0_12] : memref<8x128xf32, #tpu.memory_space<vmem>>, vector<8x128xf32>
      tpu.vector_store %arg9[%c0_11, %c0_12], %12 {strides = array<i32>} : memref<8x128xf32, #tpu.memory_space<vmem>>, vector<8x128xf32>,
    } else {
    }
    %c0 = arith.constant 0 : index
    %c0_1 = arith.constant 0 : index
    %3 = vector.load %arg9[%c0, %c0_1] : memref<8x128xf32, #tpu.memory_space<vmem>>, vector<8x128xf32>
    %c0_2 = arith.constant 0 : index
    %c0_3 = arith.constant 0 : index
    %4 = vector.load %arg3[%c0_2, %c0_3] : memref<8x128xbf16, #tpu.memory_space<vmem>>, vector<8x128xbf16>
    %c0_4 = arith.constant 0 : index
    %c0_5 = arith.constant 0 : index
    %5 = vector.load %arg4[%c0_4, %c0_5] : memref<128x128xbf16, #tpu.memory_space<vmem>>, vector<128x128xbf16>
    %cst = arith.constant dense<0.000000e+00> : vector<8x128xf32>
    %6 = tpu.matmul %4, %5, %cst {dimension_numbers = #tpu.dot_dimension_numbers<[1], [0], [0], [1], [0, 0, 1, 1], [], []>} : vector<8x128xbf16>, vector<128x128xbf16>, vector<8x128xf32> -> vector<8x128xf32>
    %7 = arith.addf %3, %6 : vector<8x128xf32>
    %c0_6 = arith.constant 0 : index
    %c0_7 = arith.constant 0 : index
    %8 = vector.load %arg9[%c0_6, %c0_7] : memref<8x128xf32, #tpu.memory_space<vmem>>, vector<8x128xf32>
    tpu.vector_store %arg9[%c0_6, %c0_7], %7 {strides = array<i32>} : memref<8x128xf32, #tpu.memory_space<vmem>>, vector<8x128xf32>,
    %c0_i32_8 = arith.constant 0 : i32
    %9 = arith.cmpi eq, %arg2, %c0_i32_8 : i32
    %10 = arith.extui %9 : i1 to i32
    %c0_i32_9 = arith.constant 0 : i32
    %11 = arith.cmpi ne, %10, %c0_i32_9 : i32
    scf.if %11 {
      %c0_10 = arith.constant 0 : index
      %c0_11 = arith.constant 0 : index
      %12 = vector.load %arg9[%c0_10, %c0_11] : memref<8x128xf32, #tpu.memory_space<vmem>>, vector<8x128xf32>
      %c0_12 = arith.constant 0 : index
      %c0_13 = arith.constant 0 : index
      %13 = vector.load %arg5[%c0_12, %c0_13] : memref<1x128xf32, #tpu.memory_space<vmem>>, vector<1x128xf32>
      %14 = vector.broadcast %13 : vector<1x128xf32> to vector<8x128xf32>
      %15 = arith.addf %12, %14 : vector<8x128xf32>
      %16 = arith.negf %15 : vector<8x128xf32>
      %17 = math.exp %16 : vector<8x128xf32>
      %cst_14 = arith.constant 1.000000e+00 : f32
      %18 = vector.broadcast %cst_14 : f32 to vector<8x128xf32>
      %19 = arith.addf %18, %17 : vector<8x128xf32>
      %20 = arith.divf %18, %19 : vector<8x128xf32>
      %c0_15 = arith.constant 0 : index
      %c0_16 = arith.constant 0 : index
      %21 = vector.load %arg7[%c0_15, %c0_16] : memref<8x128xf32, #tpu.memory_space<vmem>>, vector<8x128xf32>
      tpu.vector_store %arg7[%c0_15, %c0_16], %20 {strides = array<i32>} : memref<8x128xf32, #tpu.memory_space<vmem>>, vector<8x128xf32>,
      %c0_17 = arith.constant 0 : index
      %c0_18 = arith.constant 0 : index
      %22 = vector.load %arg6[%c0_17, %c0_18] : memref<8x128xf32, #tpu.memory_space<vmem>>, vector<8x128xf32>
      %23 = arith.cmpf olt, %22, %20 : vector<8x128xf32>
      %24 = arith.extui %23 : vector<8x128xi1> to vector<8x128xi32>
      %25 = arith.sitofp %24 : vector<8x128xi32> to vector<8x128xf32>
      %c0_19 = arith.constant 0 : index
      %c0_20 = arith.constant 0 : index
      %26 = vector.load %arg8[%c0_19, %c0_20] : memref<8x128xf32, #tpu.memory_space<vmem>>, vector<8x128xf32>
      tpu.vector_store %arg8[%c0_19, %c0_20], %25 {strides = array<i32>} : memref<8x128xf32, #tpu.memory_space<vmem>>, vector<8x128xf32>,
    } else {
    }
    return
  }
  func.func @transform_0(%arg0: i32, %arg1: i32, %arg2: i32) -> (i32, i32) {
    %c0_i32 = arith.constant 0 : i32
    return %arg0, %arg2 : i32, i32
  }
  func.func @transform_1(%arg0: i32, %arg1: i32, %arg2: i32) -> (i32, i32) {
    %c0_i32 = arith.constant 0 : i32
    return %arg2, %arg1 : i32, i32
  }
  func.func @transform_2(%arg0: i32, %arg1: i32, %arg2: i32) -> (i32, i32) {
    %c0_i32 = arith.constant 0 : i32
    %c0_i32_0 = arith.constant 0 : i32
    return %c0_i32, %arg1 : i32, i32
  }
  func.func @transform_3(%arg0: i32, %arg1: i32, %arg2: i32) -> (i32, i32) {
    %c0_i32 = arith.constant 0 : i32
    return %arg0, %arg1 : i32, i32
  }
  func.func @transform_4(%arg0: i32, %arg1: i32, %arg2: i32) -> (i32, i32) {
    %c0_i32 = arith.constant 0 : i32
    return %arg0, %arg1 : i32, i32
  }
  func.func @transform_5(%arg0: i32, %arg1: i32, %arg2: i32) -> (i32, i32) {
    %c0_i32 = arith.constant 0 : i32
    return %arg0, %arg1 : i32, i32
  }
}

</mosaic_0001>

<llo_original>
// kernel: _rbm_forward_padded.1
$region0: #{_rbm_forward_padded.1}
  #allocation0 [shape = 'u32[]', space=smem, size = 0x4, offset = 0x4, fixed_abs, tag = 'smem constant byte address 0x4 - core index']
  #allocation1 [shape = 'u32[144,128]{1,0:T(1,128)}', space=vmem, size = 0x12000, scoped, tag = 'internal scratch']
  #allocation2 [shape = 'f32[8,128]{1,0:T(8,128)}', space=vmem, size = 0x1000, scoped, tag = 'scratch operand']
  %s0 = inlined_call_operand.hbm [shape: bf16[8,128], index: 0, kind: input, shape index: {}]
  %s1 = inlined_call_operand.hbm [shape: bf16[128,128], index: 1, kind: input, shape index: {}]
  %s2 = inlined_call_operand.vmem [shape: f32[1,128], index: 2, kind: input, shape index: {}]
  %s3 = inlined_call_operand.vmem [shape: f32[8,128], index: 3, kind: input, shape index: {}]
  %s4 = inlined_call_operand.hbm [shape: f32[8,128], index: 4, kind: output, shape index: {0}]
  %s5 = inlined_call_operand.hbm [shape: f32[8,128], index: 5, kind: output, shape index: {1}]
  %6 = xla_tuple %s4, %s5
  %s7 = sld [smem:[#allocation0]]
  $region50: #{_rbm_forward_padded.1} parent=0
    _
  %s9 = ssub.s32 1, %s7
  %s10 = scalar_select 0, %s9, %s7
  $region1: #{_rbm_forward_padded.1} parent=0
    #allocation3 [shape = 'u8[2048]{0}', space=vmem, size = 0x800, scoped, tag = 'input window, operand 0, single buffered']
    #allocation4 [shape = 's32[1]{0}', space=sflag, size = 0x4, scoped, tag = 'scoped memory for _rbm_forward_padded.1']
    #allocation5 [shape = 's32[1]{0}', space=sflag, size = 0x4, scoped, tag = 'scoped memory for _rbm_forward_padded.1']
    #allocation6 [shape = 'u8[32768]{0}', space=vmem, size = 0x8000, scoped, tag = 'input window, operand 1, single buffered']
    #allocation7 [shape = 's32[1]{0}', space=sflag, size = 0x4, scoped, tag = 'scoped memory for _rbm_forward_padded.1']
    #allocation8 [shape = 'u8[4096]{0}', space=vmem, size = 0x1000, scoped, tag = 'output window, operand 0, single buffered']
    #allocation9 [shape = 'u8[4096]{0}', space=vmem, size = 0x1000, scoped, tag = 'output window, operand 1, single buffered']
    #allocation10 [shape = 's32[1]{0}', space=sflag, size = 0x4, scoped, tag = 'scoped memory for _rbm_forward_padded.1']
    %11 = vsyncpa [#allocation4], 0
    %12 = vsyncpa [#allocation7], 0
    %13 = vsyncpa [#allocation5], 0
    %14 = vsyncpa [#allocation10], 0
    // Predicated region
    $region2: #{_rbm_forward_padded.1} parent=1 // pred_check
      _
    $region3: #{_rbm_forward_padded.1} parent=1 // pred_check_branch
      %16 = sbr.rel (0) target = $region5
    $region4: #{_rbm_forward_padded.1} parent=1 // pred_region
      %s18 = ssub.s32 64, 64
      %19 = vsyncadd [#allocation4], %s18
      %s21 = sshll.u32 [#allocation3], 4
      %s22 = int_to_ptr.vmem [resolvable:$true] %s21
      %24 = dma.hbm_to_vmem [thread:$0]  %s0, 64, %s22, [#allocation4]
    $region5: #{_rbm_forward_padded.1} parent=1 // pred_fallthru
      _
    // Predicated region
    $region6: #{_rbm_forward_padded.1} parent=1 // pred_check
      _
    $region7: #{_rbm_forward_padded.1} parent=1 // pred_check_branch
      %26 = sbr.rel (0) target = $region9
    $region8: #{_rbm_forward_padded.1} parent=1 // pred_region
      %s28 = ssub.s32 1024, 1024
      %29 = vsyncadd [#allocation7], %s28
      %s30 = sshll.u32 [#allocation6], 4
      %s31 = int_to_ptr.vmem [resolvable:$true] %s30
      %36 = dma.hbm_to_vmem [thread:$0]  %s1, 1024, %s31, [#allocation7], 64, 64, 4
    $region9: #{_rbm_forward_padded.1} parent=1 // pred_fallthru
      _
    // Predicated region
    $region10: #{_rbm_forward_padded.1} parent=1 // pred_check
      _
    $region11: #{_rbm_forward_padded.1} parent=1 // pred_check_branch
      %38 = sbr.rel (0) target = $region13
    $region12: #{_rbm_forward_padded.1} parent=1 // pred_region
      _
    $region13: #{_rbm_forward_padded.1} parent=1 // pred_fallthru
      _
    // Predicated region
    $region14: #{_rbm_forward_padded.1} parent=1 // pred_check
      _
    $region15: #{_rbm_forward_padded.1} parent=1 // pred_check_branch
      %40 = sbr.rel (0) target = $region17
    $region16: #{_rbm_forward_padded.1} parent=1 // pred_region
      _
    $region17: #{_rbm_forward_padded.1} parent=1 // pred_fallthru
      _
    // Predicated region
    $region18: #{_rbm_forward_padded.1} parent=1 // pred_check
      _
    $region19: #{_rbm_forward_padded.1} parent=1 // pred_check_branch
      %42 = sbr.rel (0) target = $region21
    $region20: #{_rbm_forward_padded.1} parent=1 // pred_region
      %43 = dma.done [#allocation4], 64
    $region21: #{_rbm_forward_padded.1} parent=1 // pred_fallthru
      _
    // Predicated region
    $region22: #{_rbm_forward_padded.1} parent=1 // pred_check
      _
    $region23: #{_rbm_forward_padded.1} parent=1 // pred_check_branch
      %45 = sbr.rel (0) target = $region25
    $region24: #{_rbm_forward_padded.1} parent=1 // pred_region
      %46 = dma.done [#allocation7], 1024
    $region25: #{_rbm_forward_padded.1} parent=1 // pred_fallthru
      _
    %p48 = scmp.eq.s32.totalorder 0, 0
    // Predicated region
    $region26: #{_rbm_forward_padded.1} parent=1 // pred_check
      %p49 = pneg %p48
    $region27: #{_rbm_forward_padded.1} parent=1 // pred_check_branch
      %51 = sbr.rel (%p49) target = $region29
    $region28: #{_rbm_forward_padded.1} parent=1 // pred_region
      %52 = vst [vmem:[#allocation2] sm:$0xff] 0.0
    $region29: #{_rbm_forward_padded.1} parent=1 // pred_fallthru
      _
    %v53 = vld [vmem:[#allocation2] sm:$0xff]
    %v54 = vld [vmem:[#allocation3] sm:$0xf]
    %v55 = vld [vmem:[#allocation6] sm:$0xf]
    %v56 = vld [vmem:[#allocation6 + $0x4] sm:$0xf]
    %v57 = vld [vmem:[#allocation6 + $0x8] sm:$0xf]
    %v58 = vld [vmem:[#allocation6 + $0xc] sm:$0xf]
    %v59 = vld [vmem:[#allocation6 + $0x10] sm:$0xf]
    %v60 = vld [vmem:[#allocation6 + $0x14] sm:$0xf]
    %v61 = vld [vmem:[#allocation6 + $0x18] sm:$0xf]
    %v62 = vld [vmem:[#allocation6 + $0x1c] sm:$0xf]
    %v63 = vld [vmem:[#allocation6 + $0x20] sm:$0xf]
    %v64 = vld [vmem:[#allocation6 + $0x24] sm:$0xf]
    %v65 = vld [vmem:[#allocation6 + $0x28] sm:$0xf]
    %v66 = vld [vmem:[#allocation6 + $0x2c] sm:$0xf]
    %v67 = vld [vmem:[#allocation6 + $0x30] sm:$0xf]
    %v68 = vld [vmem:[#allocation6 + $0x34] sm:$0xf]
    %v69 = vld [vmem:[#allocation6 + $0x38] sm:$0xf]
    %v70 = vld [vmem:[#allocation6 + $0x3c] sm:$0xf]
    %v87 = vunpack.c.l.b16 %v55
    %v88 = vunpack.c.l.b16 %v56
    %v89 = vunpack.c.l.b16 %v57
    %v90 = vunpack.c.l.b16 %v58
    %v91 = vunpack.c.l.b16 %v59
    %v92 = vunpack.c.l.b16 %v60
    %v93 = vunpack.c.l.b16 %v61
    %v94 = vunpack.c.l.b16 %v62
    %v95 = vunpack.c.l.b16 %v63
    %v96 = vunpack.c.l.b16 %v64
    %v97 = vunpack.c.l.b16 %v65
    %v98 = vunpack.c.l.b16 %v66
    %v99 = vunpack.c.l.b16 %v67
    %v100 = vunpack.c.l.b16 %v68
    %v101 = vunpack.c.l.b16 %v69
    %v102 = vunpack.c.l.b16 %v70
    %v103 = vpack.c.b16 %v88, %v87
    %v104 = vpack.c.b16 %v90, %v89
    %v105 = vpack.c.b16 %v92, %v91
    %v106 = vpack.c.b16 %v94, %v93
    %v107 = vpack.c.b16 %v96, %v95
    %v108 = vpack.c.b16 %v98, %v97
    %v109 = vpack.c.b16 %v100, %v99
    %v110 = vpack.c.b16 %v102, %v101
    %119 = vmatprep.subr.bf16.mxu0 0
    %120 = vmatpush1.bf16.msra.mxu0 %v103
    %121 = vmatprep.subr.bf16.mxu0 0
    %122 = vmatpush1.bf16.msra.mxu0 %v104
    %123 = vmatprep.subr.bf16.mxu0 0
    %124 = vmatpush1.bf16.msra.mxu0 %v105
    %125 = vmatprep.subr.bf16.mxu0 0
    %126 = vmatpush1.bf16.msra.mxu0 %v106
    %127 = vmatprep.subr.bf16.mxu0 0
    %128 = vmatpush1.bf16.msra.mxu0 %v107
    %129 = vmatprep.subr.bf16.mxu0 0
    %130 = vmatpush1.bf16.msra.mxu0 %v108
    %131 = vmatprep.subr.bf16.mxu0 0
    %132 = vmatpush1.bf16.msra.mxu0 %v109
    %133 = vmatprep.subr.bf16.mxu0 0
    %134 = vmatpush1.bf16.msra.mxu0 %v110
    %135 = vmatprep.subr.bf16.mxu0 0
    %136 = vmatpush1.bf16.msra.mxu0 0
    %137 = vmatprep.subr.bf16.mxu0 0
    %138 = vmatpush1.bf16.msra.mxu0 0
    %139 = vmatprep.subr.bf16.mxu0 0
    %140 = vmatpush1.bf16.msra.mxu0 0
    %141 = vmatprep.subr.bf16.mxu0 0
    %142 = vmatpush1.bf16.msra.mxu0 0
    %143 = vmatprep.subr.bf16.mxu0 0
    %144 = vmatpush1.bf16.msra.mxu0 0
    %145 = vmatprep.subr.bf16.mxu0 0
    %146 = vmatpush1.bf16.msra.mxu0 0
    %147 = vmatprep.subr.bf16.mxu0 0
    %148 = vmatpush1.bf16.msra.mxu0 0
    %149 = vmatprep.subr.bf16.mxu0 0
    %150 = vmatpush1.bf16.msra.mxu0 0
    %151 = vmatprep.mubr.bf16.mxu0 0
    %152 = vmatmul.mubr.bf16.gmra.mrb[0].mxu0 %v54
    %v153 = vpop.f32.mrb[0].mxu0
    %v154 = vadd.f32 0.0, %v153
    %v155 = vpop.f32.mrb[0].mxu0
    %v156 = vpop.f32.mrb[0].mxu0
    %v157 = vpop.f32.mrb[0].mxu0
    %158 = vdwg.mxu0
    %v159 = vadd.f32 %v53, %v154
    %160 = vst [vmem:[#allocation2] sm:$0xff] %v159
    // Predicated region
    $region30: #{_rbm_forward_padded.1} parent=1 // pred_check
      %p161 = pneg %p48
    $region31: #{_rbm_forward_padded.1} parent=1 // pred_check_branch
      %163 = sbr.rel (%p161) target = $region33
    $region32: #{_rbm_forward_padded.1} parent=1 // pred_region
      %v164 = vld [vmem:[#allocation2] sm:$0xff]
      %v165 = vld [vmem:[%s2] sm:$0x1]
      %v167 = vlaneseq
      %v168 = vshrl.u32 %v167, 7
      %v169 = vsub.s32 0, %v168
      %v170 = vrot.slane %v165, %v169
      %v172 = vadd.f32 %v164, %v170
      %v173 = vxor.u32 %v172, 2147483648
      %v174 = vmul.f32 %v173, 1.442695
      %v175 = vpow.pop %v174
      %v176 = vadd.f32 %v175, 1.0
      %v177 = vrcp.pop %v176
      %v178 = vmul.f32 1.0, %v177
      %179 = vst [vmem:[#allocation8] sm:$0xff] %v178
      %v180 = vld [vmem:[%s3] sm:$0xff]
      %vm181 = vcmp.lt.f32.partialorder %v180, %v178
      %v182 = vsel %vm181, 1, 0
      %v183 = vcvt.s32.f32 %v182
      %184 = vst [vmem:[#allocation9] sm:$0xff] %v183
    $region33: #{_rbm_forward_padded.1} parent=1 // pred_fallthru
      _
    // Predicated region
    $region34: #{_rbm_forward_padded.1} parent=1 // pred_check
      _
    $region35: #{_rbm_forward_padded.1} parent=1 // pred_check_branch
      %186 = sbr.rel (0) target = $region37
    $region36: #{_rbm_forward_padded.1} parent=1 // pred_region
      %s188 = ssub.s32 128, 128
      %189 = vsyncadd [#allocation5], %s188
      %s191 = sshll.u32 [#allocation8], 4
      %s192 = int_to_ptr.vmem [resolvable:$true] %s191
      %194 = dma.vmem_to_hbm [thread:$0]  %s192, 128, %s4, [#allocation5]
    $region37: #{_rbm_forward_padded.1} parent=1 // pred_fallthru
      _
    // Predicated region
    $region38: #{_rbm_forward_padded.1} parent=1 // pred_check
      _
    $region39: #{_rbm_forward_padded.1} parent=1 // pred_check_branch
      %196 = sbr.rel (0) target = $region41
    $region40: #{_rbm_forward_padded.1} parent=1 // pred_region
      %s198 = ssub.s32 128, 128
      %199 = vsyncadd [#allocation10], %s198
      %s201 = sshll.u32 [#allocation9], 4
      %s202 = int_to_ptr.vmem [resolvable:$true] %s201
      %204 = dma.vmem_to_hbm [thread:$0]  %s202, 128, %s5, [#allocation10]
    $region41: #{_rbm_forward_padded.1} parent=1 // pred_fallthru
      _
    // Predicated region
    $region42: #{_rbm_forward_padded.1} parent=1 // pred_check
      _
    $region43: #{_rbm_forward_padded.1} parent=1 // pred_check_branch
      %206 = sbr.rel (0) target = $region45
    $region44: #{_rbm_forward_padded.1} parent=1 // pred_region
      %207 = dma.done [#allocation5], 128
    $region45: #{_rbm_forward_padded.1} parent=1 // pred_fallthru
      _
    // Predicated region
    $region46: #{_rbm_forward_padded.1} parent=1 // pred_check
      _
    $region47: #{_rbm_forward_padded.1} parent=1 // pred_check_branch
      %209 = sbr.rel (0) target = $region49
    $region48: #{_rbm_forward_padded.1} parent=1 // pred_region
      %210 = dma.done [#allocation10], 128
    $region49: #{_rbm_forward_padded.1} parent=1 // pred_fallthru
      _
    %211 = vsyncpa [#allocation4], 1
    %212 = vsyncpa [#allocation7], 1
    %213 = vsyncpa [#allocation5], 1
    %214 = vsyncpa [#allocation10], 1

</llo_original>
